<compile_context>
chip_gen: v6e
topology: v6e:2x2x1
jax: 0.10.0
libtpu: 0.0.40
codegen_flags: <defaults>
</compile_context>

<pallas_src>
import jax
import jax.numpy as jnp
from jax.experimental import pallas as pl
from jax.experimental.pallas import tpu as pltpu


_L_TILE_CANDIDATES = (1024, 512, 256, 128)   # multiples of 128 (lane width)


def _pick_l_tile(L: int) -> int:
    """Largest lane-aligned tile (<=1024) that divides L; fall back to a single full block."""
    if L <= _L_TILE_CANDIDATES[0] or L % 128 != 0:
        return L                      # block == full dim is always a legal BlockSpec
    for t in _L_TILE_CANDIDATES:
        if L % t == 0:
            return t
    return L


def _make_kernel(K: int, T: int, pad: int, rpad: int, mxu_dtype):
    """Per-(batch, length-tile) kernel body. K, T, pad, rpad are compile-time constants."""

    def kernel(x_ref, halo_ref, wd_ref, wp_ref, o_ref, xw_ref):
        # x_ref   : (1, C_in, T)       current length tile of the *unpadded* input
        # halo_ref: (1, 1, C_in, Wh)   [left halo (pad cols) | right halo (rpad cols)]
        # wd_ref  : (C_in, K)          depthwise filters (constant index_map -> VMEM resident)
        # wp_ref  : (C_out, C_in)      pointwise weights (constant index_map -> VMEM resident)
        # o_ref   : (1, C_out, T)
        # xw_ref  : (C_in, T + K - 1)  f32 staging window = [lhalo | x tile | rhalo]

        # Stage the halo'd window into VMEM scratch (f32 so the MAC below is v5e-safe).
        xw_ref[:, pl.ds(pad, T)] = x_ref[0].astype(jnp.float32)
        if pad > 0 or rpad > 0:
            halo = halo_ref[...][0, 0].astype(jnp.float32)          # (C_in, K-1)
            if pad > 0:
                xw_ref[:, pl.ds(0, pad)] = halo[:, :pad]
            if rpad > 0:
                xw_ref[:, pl.ds(pad + T, rpad)] = halo[:, pad:pad + rpad]

        # Depthwise conv: K shifted ref loads (vld slots) * per-channel scalar columns (VPU MAC).
        wd = wd_ref[...].astype(jnp.float32)                        # (C_in, K)
        acc = xw_ref[:, pl.ds(0, T)] * wd[:, 0:1]
        for k in range(1, K):                                       # K is static -> unrolled
            acc = acc + xw_ref[:, pl.ds(k, T)] * wd[:, k:k + 1]

        dw = jnp.maximum(acc, 0.0)                                  # ReLU, (C_in, T) f32

        # Pointwise (1x1) conv == matmul over channels on the MXU; bf16 operands for bf16 models,
        # f32 otherwise, f32 accumulation either way.
        out = jnp.dot(wp_ref[...].astype(mxu_dtype), dw.astype(mxu_dtype),
                      preferred_element_type=jnp.float32)           # (C_out, T)
        o_ref[0] = out.astype(o_ref.dtype)

    return kernel


def depthwise_separable_conv(x, w_dw, w_pw, kernel_size):
    """
    x    : (N, C_in, L)
    w_dw : (C_in, 1, K)     depthwise conv weight (PyTorch layout, groups=C_in, bias=False)
    w_pw : (C_out, C_in, 1) pointwise conv weight (PyTorch layout, bias=False)
    Returns (N, C_out, L), matching DepthwiseSeparableConv.forward (even K: trimmed last step).
    """
    N, C_in, L = x.shape
    K = int(kernel_size)
    pad = K // 2                      # left padding (PyTorch padding=K//2)
    rpad = K - 1 - pad                # right context actually needed for the kept L outputs
    C_out = w_pw.shape[0]

    T = _pick_l_tile(L)
    num_l = L // T
    Wh = max(K - 1, 1)                # halo side-band width (>=1 so the block is never 0-wide)

    # Halo side-band: per length-tile, the `pad` columns left of the tile and `rpad` columns right
    # of it (zeros at the sequence boundary). Only K-1 columns per tile, so x never has to be
    # re-materialized padded in HBM.
    if K > 1 and num_l > 1:
        xr = x.reshape(N, C_in, num_l, T)
        left = jnp.concatenate(
            [jnp.zeros((N, C_in, 1, pad), x.dtype), xr[:, :, :-1, T - pad:]], axis=2)
        parts = [left]
        if rpad > 0:
            right = jnp.concatenate(
                [xr[:, :, 1:, :rpad], jnp.zeros((N, C_in, 1, rpad), x.dtype)], axis=2)
            parts.append(right)
        halo = jnp.concatenate(parts, axis=3) if len(parts) > 1 else left  # (N, C_in, num_l, K-1)
        halo = jnp.transpose(halo, (0, 2, 1, 3))                            # (N, num_l, C_in, K-1)
    else:
        halo = jnp.zeros((N, num_l, C_in, Wh), x.dtype)   # boundaries are zero padding anyway

    wd = w_dw.reshape(C_in, K)
    wp = w_pw.reshape(C_out, C_in)
    mxu_dtype = jnp.bfloat16 if x.dtype == jnp.bfloat16 else jnp.float32

    kernel = _make_kernel(K, T, pad, rpad, mxu_dtype)

    return pl.pallas_call(
        kernel,
        out_shape=jax.ShapeDtypeStruct((N, C_out, L), x.dtype),
        grid_spec=pltpu.PrefetchScalarGridSpec(
            num_scalar_prefetch=0,
            grid=(N, num_l),
            in_specs=[
                pl.BlockSpec((1, C_in, T), lambda n, l: (n, 0, l)),        # streamed input tile
                pl.BlockSpec((1, 1, C_in, Wh), lambda n, l: (n, l, 0, 0)), # tiny halo side-band
                pl.BlockSpec((C_in, K), lambda n, l: (0, 0)),              # weights: constant ->
                pl.BlockSpec((C_out, C_in), lambda n, l: (0, 0)),          #   no per-step re-DMA
            ],
            out_specs=pl.BlockSpec((1, C_out, T), lambda n, l: (n, 0, l)),
            scratch_shapes=[pltpu.VMEM((C_in, T + K - 1), jnp.float32)],
        ),
        compiler_params=pltpu.CompilerParams(
            dimension_semantics=("parallel", "parallel"),   # shard both axes across TCs (v7x)
            vmem_limit_bytes=32 * 1024 * 1024,
        ),
    )(x, halo, wd, wp)


def _reference(x, w_dw, w_pw, kernel_size):
    """Pure-JAX reference mirroring nn.Conv1d semantics (incl. even-K trim) for self-check."""
    K = int(kernel_size)
    pad = K // 2
    rpad = K - 1 - pad
    N, C_in, L = x.shape
    C_out = w_pw.shape[0]
    xp = jnp.pad(x, ((0, 0), (0, 0), (pad, rpad)))
    wd = w_dw.reshape(C_in, K)
    dw = jnp.zeros((N, C_in, L), jnp.float32)
    for k in range(K):
        dw = dw + xp[:, :, k:k + L] * wd[:, k][None, :, None]
    dw = jnp.maximum(dw, 0.0)
    return jnp.einsum("oc,ncl->nol", w_pw.reshape(C_out, C_in), dw).astype(x.dtype)


if __name__ == "__main__":
    key = jax.random.PRNGKey(0)
    k1, k2, k3 = jax.random.split(key, 3)

    jitted = jax.jit(depthwise_separable_conv, static_argnums=(3,))

    def run_case(case_key, batch, in_ch, out_ch, length, ksize):
        kx, kd, kp = jax.random.split(case_key, 3)
        x = jax.random.normal(kx, (batch, in_ch, length), dtype=jnp.float32)
        w_dw = 0.3 * jax.random.normal(kd, (in_ch, 1, ksize), dtype=jnp.float32)
        w_pw = 0.3 * jax.random.normal(kp, (out_ch, in_ch, 1), dtype=jnp.float32)
        out = jax.block_until_ready(jitted(x, w_dw, w_pw, ksize))
        ref = _reference(x, w_dw, w_pw, ksize)
        assert out.shape == (batch, out_ch, length), out.shape
        assert jnp.allclose(out, ref, atol=1e-4, rtol=1e-4), "mismatch vs reference"

    # Primary small case consistent with the module (odd kernel size).
    run_case(k1, batch=2, in_ch=4, out_ch=8, length=16, ksize=3)
    # Even kernel size exercises the PyTorch x_conv[:, :, :-1] trim semantics (handled in-kernel).
    run_case(k2, batch=2, in_ch=4, out_ch=8, length=16, ksize=4)
    # Longer sequence exercises the tiled path: 2 length tiles of 1024 with halo exchange.
    run_case(k3, batch=2, in_ch=8, out_ch=16, length=2048, ksize=5)

    print("KERNEL_OK")
</pallas_src>

<mosaic_0001>
module attributes {stable_mosaic.version = 11 : i64} {
  func.func @kernel(%arg0: i32, %arg1: i32, %arg2: memref<1x4x16xf32, #tpu.memory_space<vmem>>, %arg3: memref<1x1x4x2xf32, #tpu.memory_space<vmem>>, %arg4: memref<4x3xf32, #tpu.memory_space<vmem>>, %arg5: memref<8x4xf32, #tpu.memory_space<vmem>>, %arg6: memref<1x8x16xf32, #tpu.memory_space<vmem>>, %arg7: memref<4x18xf32, #tpu.memory_space<vmem>>) attributes {dimension_semantics = [#tpu.dimension_semantics<parallel>, #tpu.dimension_semantics<parallel>], iteration_bounds = array<i64: 2, 1>, scalar_prefetch = 0 : i64, scratch_operands = 1 : i64, tpu.core_type = #tpu.core_type<tc>, window_params = [{transform_indices = @transform_0, window_bounds = array<i64: 1, 4, 16>}, {transform_indices = @transform_1, window_bounds = array<i64: 1, 1, 4, 2>}, {pipeline_mode = #tpu.pipeline_mode<synchronous>, transform_indices = @transform_2, window_bounds = array<i64: 4, 3>}, {pipeline_mode = #tpu.pipeline_mode<synchronous>, transform_indices = @transform_3, window_bounds = array<i64: 8, 4>}, {transform_indices = @transform_4, window_bounds = array<i64: 1, 8, 16>}]} {
    %c0 = arith.constant 0 : index
    %c0_0 = arith.constant 0 : index
    %c0_1 = arith.constant 0 : index
    %0 = vector.load %arg2[%c0, %c0_0, %c0_1] : memref<1x4x16xf32, #tpu.memory_space<vmem>>, vector<1x4x16xf32>
    %1 = vector.shape_cast %0 : vector<1x4x16xf32> to vector<4x16xf32>
    %c0_2 = arith.constant 0 : index
    %c1 = arith.constant 1 : index
    %2 = vector.load %arg7[%c0_2, %c1] : memref<4x18xf32, #tpu.memory_space<vmem>>, vector<4x16xf32>
    tpu.vector_store %arg7[%c0_2, %c1], %1 {strides = array<i32>} : memref<4x18xf32, #tpu.memory_space<vmem>>, vector<4x16xf32>,
    %c0_3 = arith.constant 0 : index
    %c0_4 = arith.constant 0 : index
    %c0_5 = arith.constant 0 : index
    %c0_6 = arith.constant 0 : index
    %3 = vector.load %arg3[%c0_3, %c0_4, %c0_5, %c0_6] : memref<1x1x4x2xf32, #tpu.memory_space<vmem>>, vector<1x1x4x2xf32>
    %4 = vector.shape_cast %3 : vector<1x1x4x2xf32> to vector<4x2xf32>
    %5 = vector.extract_strided_slice %4 {offsets = [0, 0], sizes = [4, 1], strides = [1, 1]} : vector<4x2xf32> to vector<4x1xf32>
    %c0_7 = arith.constant 0 : index
    %c0_8 = arith.constant 0 : index
    %6 = vector.load %arg7[%c0_7, %c0_8] : memref<4x18xf32, #tpu.memory_space<vmem>>, vector<4x1xf32>
    tpu.vector_store %arg7[%c0_7, %c0_8], %5 {strides = array<i32>} : memref<4x18xf32, #tpu.memory_space<vmem>>, vector<4x1xf32>,
    %7 = vector.extract_strided_slice %4 {offsets = [0, 1], sizes = [4, 1], strides = [1, 1]} : vector<4x2xf32> to vector<4x1xf32>
    %c0_9 = arith.constant 0 : index
    %c17 = arith.constant 17 : index
    %8 = vector.load %arg7[%c0_9, %c17] : memref<4x18xf32, #tpu.memory_space<vmem>>, vector<4x1xf32>
    tpu.vector_store %arg7[%c0_9, %c17], %7 {strides = array<i32>} : memref<4x18xf32, #tpu.memory_space<vmem>>, vector<4x1xf32>,
    %c0_10 = arith.constant 0 : index
    %c0_11 = arith.constant 0 : index
    %9 = vector.load %arg4[%c0_10, %c0_11] : memref<4x3xf32, #tpu.memory_space<vmem>>, vector<4x3xf32>
    %c0_12 = arith.constant 0 : index
    %c0_13 = arith.constant 0 : index
    %10 = vector.load %arg7[%c0_12, %c0_13] : memref<4x18xf32, #tpu.memory_space<vmem>>, vector<4x16xf32>
    %11 = vector.extract_strided_slice %9 {offsets = [0, 0], sizes = [4, 1], strides = [1, 1]} : vector<4x3xf32> to vector<4x1xf32>
    %12 = vector.broadcast %11 : vector<4x1xf32> to vector<4x16xf32>
    %13 = arith.mulf %10, %12 : vector<4x16xf32>
    %c0_14 = arith.constant 0 : index
    %c1_15 = arith.constant 1 : index
    %14 = vector.load %arg7[%c0_14, %c1_15] : memref<4x18xf32, #tpu.memory_space<vmem>>, vector<4x16xf32>
    %15 = vector.extract_strided_slice %9 {offsets = [0, 1], sizes = [4, 1], strides = [1, 1]} : vector<4x3xf32> to vector<4x1xf32>
    %16 = vector.broadcast %15 : vector<4x1xf32> to vector<4x16xf32>
    %17 = arith.mulf %14, %16 : vector<4x16xf32>
    %18 = arith.addf %13, %17 : vector<4x16xf32>
    %c0_16 = arith.constant 0 : index
    %c2 = arith.constant 2 : index
    %19 = vector.load %arg7[%c0_16, %c2] : memref<4x18xf32, #tpu.memory_space<vmem>>, vector<4x16xf32>
    %20 = vector.extract_strided_slice %9 {offsets = [0, 2], sizes = [4, 1], strides = [1, 1]} : vector<4x3xf32> to vector<4x1xf32>
    %21 = vector.broadcast %20 : vector<4x1xf32> to vector<4x16xf32>
    %22 = arith.mulf %19, %21 : vector<4x16xf32>
    %23 = arith.addf %18, %22 : vector<4x16xf32>
    %cst = arith.constant 0.000000e+00 : f32
    %24 = vector.broadcast %cst : f32 to vector<4x16xf32>
    %25 = arith.maximumf %23, %24 : vector<4x16xf32>
    %c0_17 = arith.constant 0 : index
    %c0_18 = arith.constant 0 : index
    %26 = vector.load %arg5[%c0_17, %c0_18] : memref<8x4xf32, #tpu.memory_space<vmem>>, vector<8x4xf32>
    %cst_19 = arith.constant dense<0.000000e+00> : vector<8x16xf32>
    %27 = tpu.matmul %26, %25, %cst_19 {dimension_numbers = #tpu.dot_dimension_numbers<[1], [0], [0], [1], [0, 0, 1, 1], [], []>} : vector<8x4xf32>, vector<4x16xf32>, vector<8x16xf32> -> vector<8x16xf32>
    %c0_20 = arith.constant 0 : index
    %c0_21 = arith.constant 0 : index
    %c0_22 = arith.constant 0 : index
    %28 = vector.load %arg6[%c0_20, %c0_21, %c0_22] : memref<1x8x16xf32, #tpu.memory_space<vmem>>, vector<1x8x16xf32>
    %29 = vector.shape_cast %28 : vector<1x8x16xf32> to vector<8x16xf32>
    %30 = vector.shape_cast %27 : vector<8x16xf32> to vector<1x8x16xf32>
    tpu.vector_store %arg6[%c0_20, %c0_21, %c0_22], %30 {strides = array<i32>} : memref<1x8x16xf32, #tpu.memory_space<vmem>>, vector<1x8x16xf32>,
    return
  }
  func.func @transform_0(%arg0: i32, %arg1: i32) -> (i32, i32, i32) {
    %c0_i32 = arith.constant 0 : i32
    %c0_i32_0 = arith.constant 0 : i32
    return %arg0, %c0_i32, %arg1 : i32, i32, i32
  }
  func.func @transform_1(%arg0: i32, %arg1: i32) -> (i32, i32, i32, i32) {
    %c0_i32 = arith.constant 0 : i32
    %c0_i32_0 = arith.constant 0 : i32
    %c0_i32_1 = arith.constant 0 : i32
    return %arg0, %arg1, %c0_i32, %c0_i32_0 : i32, i32, i32, i32
  }
  func.func @transform_2(%arg0: i32, %arg1: i32) -> (i32, i32) {
    %c0_i32 = arith.constant 0 : i32
    %c0_i32_0 = arith.constant 0 : i32
    %c0_i32_1 = arith.constant 0 : i32
    return %c0_i32, %c0_i32_0 : i32, i32
  }
  func.func @transform_3(%arg0: i32, %arg1: i32) -> (i32, i32) {
    %c0_i32 = arith.constant 0 : i32
    %c0_i32_0 = arith.constant 0 : i32
    %c0_i32_1 = arith.constant 0 : i32
    return %c0_i32, %c0_i32_0 : i32, i32
  }
  func.func @transform_4(%arg0: i32, %arg1: i32) -> (i32, i32, i32) {
    %c0_i32 = arith.constant 0 : i32
    %c0_i32_0 = arith.constant 0 : i32
    return %arg0, %c0_i32, %arg1 : i32, i32, i32
  }
}

</mosaic_0001>

<llo_original>
// kernel: depthwise_separable_conv.1
$region0: #{depthwise_separable_conv.1}
  #allocation0 [shape = 'u32[]', space=smem, size = 0x4, offset = 0x4, fixed_abs, tag = 'smem constant byte address 0x4 - core index']
  #allocation1 [shape = 'u32[144,128]{1,0:T(1,128)}', space=vmem, size = 0x12000, scoped, tag = 'internal scratch']
  #allocation2 [shape = 'f32[4,18]{1,0:T(4,128)}', space=vmem, size = 0x800, scoped, tag = 'scratch operand']
  %s0 = inlined_call_operand.vmem [shape: f32[2,4,16], index: 0, kind: input, shape index: {}]
  %s1 = inlined_call_operand.vmem [shape: f32[2,1,4,2], index: 1, kind: input, shape index: {}]
  %s2 = inlined_call_operand.vmem [shape: f32[4,3], index: 2, kind: input, shape index: {}]
  %s3 = inlined_call_operand.vmem [shape: f32[8,4], index: 3, kind: input, shape index: {}]
  %s4 = inlined_call_operand.hbm [shape: f32[2,8,16], index: 4, kind: output, shape index: {}]
  %s5 = sld [smem:[#allocation0]]
  $region49: #{depthwise_separable_conv.1} parent=0
    _
  %s7 = ssub.s32 1, %s5
  %s8 = scalar_select 0, %s7, %s5
  $region1: #{depthwise_separable_conv.1} parent=0
    #allocation3 [shape = 'u8[8192]{0}', space=vmem, size = 0x2000, scoped, tag = 'output window, operand 0']
    #allocation4 [shape = 's32[2]{0}', space=sflag, size = 0x8, scoped, tag = 'scoped memory for depthwise_separable_conv.1']
    %9 = vsyncpa [#allocation4], 0
    %s10 = scalar_lea.sflag [#allocation4], 1
    %11 = vsyncpa %s10, 0
    loop: start=0, step=1, limit=4
    $region2: #{depthwise_separable_conv.1} parent=1 // loop_pre_header
      _
    $region3: #{depthwise_separable_conv.1} parent=1 // loop_header
      %s13 = sphi 0, %s17
      %p14 = scmp.ge.s32.totalorder %s13, 4
      %s20 = sphi 0, %s32
      %s21 = sphi 0, %s28
      %s22 = sphi 0, %s20
      %s23 = sphi 0, %s21
      %s24 = sphi 0, %s22
      %s25 = sphi 0, %s23
      %s37 = sphi 0, %s39
      %s40 = sphi 0, %s37
      %s41 = sphi 0, %s40
      %s57 = sphi 0, %s41
      %s65 = sphi 0, %s67
      %s68 = sphi 0, %s65
      %s69 = sphi 0, %s68
      %s85 = sphi 0, %s69
      %s89 = sphi 0, %s89
      %s91 = sphi 0, %s89
      %s92 = sphi 0, %s91
      %s106 = sphi 0, %s92
      %s110 = sphi 0, %s110
      %s112 = sphi 0, %s110
      %s113 = sphi 0, %s112
      %s127 = sphi 0, %s113
      %s135 = sphi 0, %s137
      %s138 = sphi 0, %s135
      %s139 = sphi 0, %s138
      %s155 = sphi 0, %s139
    $region4: #{depthwise_separable_conv.1} parent=1 // loop_header_branch
      %16 = sbr.rel (%p14) target = $region8
    $region5: #{depthwise_separable_conv.1} parent=1 // loop_body
      %s18 = ssub.s32 %s13, 1
      %s19 = ssub.s32 %s13, 2
      %s26 = sadd.s32 1, %s21
      %p27 = scmp.ge.s32.totalorder %s26, 1
      %s28 = scalar_select %p27, 0, %s26
      %s29 = sadd.s32 1, %s20
      %s30 = scalar_select %p27, %s29, %s20
      %p31 = scmp.ge.s32.totalorder %s30, 2
      %s32 = scalar_select %p31, 0, %s30
      %s33 = ssub.s32 %s20, %s32
      %s34 = ssub.s32 %s21, %s28
      %s35 = sor.u32 %s33, %s34
      %p36 = scmp.eq.s32.totalorder %s35, 0
      %s38 = sadd.s32 %s37, 1
      %s39 = scalar_select %p36, %s37, %s38
      %p42 = pneg %p36
      %p43 = scmp.eq.s32.totalorder %s13, 1
      %p44 = por %p42, %p43
      %p45 = scmp.ne.s32.totalorder %s37, %s40
      %p46 = scmp.eq.s32.totalorder %s13, 0
      %p47 = por %p45, %p46
      %p48 = scmp.ne.s32.totalorder %s37, %s40
      %p49 = scmp.eq.s32.totalorder %s18, 1
      %p50 = por %p48, %p49
      %p51 = scmp.ne.s32.totalorder %s40, %s41
      %p52 = scmp.eq.s32.totalorder %s18, 0
      %p53 = por %p51, %p52
      %p54 = scmp.ne.s32.totalorder %s40, %s41
      %p55 = scmp.eq.s32.totalorder %s19, 1
      %p56 = por %p54, %p55
      %p58 = scmp.ne.s32.totalorder %s41, %s57
      %p59 = scmp.eq.s32.totalorder %s19, 0
      %p60 = por %p58, %p59
      %s61 = ssub.s32 %s20, %s32
      %s62 = ssub.s32 %s21, %s28
      %s63 = sor.u32 %s61, %s62
      %p64 = scmp.eq.s32.totalorder %s63, 0
      %s66 = sadd.s32 %s65, 1
      %s67 = scalar_select %p64, %s65, %s66
      %p70 = pneg %p64
      %p71 = scmp.eq.s32.totalorder %s13, 1
      %p72 = por %p70, %p71
      %p73 = scmp.ne.s32.totalorder %s65, %s68
      %p74 = scmp.eq.s32.totalorder %s13, 0
      %p75 = por %p73, %p74
      %p76 = scmp.ne.s32.totalorder %s65, %s68
      %p77 = scmp.eq.s32.totalorder %s18, 1
      %p78 = por %p76, %p77
      %p79 = scmp.ne.s32.totalorder %s68, %s69
      %p80 = scmp.eq.s32.totalorder %s18, 0
      %p81 = por %p79, %p80
      %p82 = scmp.ne.s32.totalorder %s68, %s69
      %p83 = scmp.eq.s32.totalorder %s19, 1
      %p84 = por %p82, %p83
      %p86 = scmp.ne.s32.totalorder %s69, %s85
      %p87 = scmp.eq.s32.totalorder %s19, 0
      %p88 = por %p86, %p87
      %s90 = sadd.s32 %s89, 1
      %p93 = scmp.eq.s32.totalorder %s13, 1
      %p94 = scmp.ne.s32.totalorder %s89, %s91
      %p95 = scmp.eq.s32.totalorder %s13, 0
      %p96 = por %p94, %p95
      %p97 = scmp.ne.s32.totalorder %s89, %s91
      %p98 = scmp.eq.s32.totalorder %s18, 1
      %p99 = por %p97, %p98
      %p100 = scmp.ne.s32.totalorder %s91, %s92
      %p101 = scmp.eq.s32.totalorder %s18, 0
      %p102 = por %p100, %p101
      %p103 = scmp.ne.s32.totalorder %s91, %s92
      %p104 = scmp.eq.s32.totalorder %s19, 1
      %p105 = por %p103, %p104
      %p107 = scmp.ne.s32.totalorder %s92, %s106
      %p108 = scmp.eq.s32.totalorder %s19, 0
      %p109 = por %p107, %p108
      %s111 = sadd.s32 %s110, 1
      %p114 = scmp.eq.s32.totalorder %s13, 1
      %p115 = scmp.ne.s32.totalorder %s110, %s112
      %p116 = scmp.eq.s32.totalorder %s13, 0
      %p117 = por %p115, %p116
      %p118 = scmp.ne.s32.totalorder %s110, %s112
      %p119 = scmp.eq.s32.totalorder %s18, 1
      %p120 = por %p118, %p119
      %p121 = scmp.ne.s32.totalorder %s112, %s113
      %p122 = scmp.eq.s32.totalorder %s18, 0
      %p123 = por %p121, %p122
      %p124 = scmp.ne.s32.totalorder %s112, %s113
      %p125 = scmp.eq.s32.totalorder %s19, 1
      %p126 = por %p124, %p125
      %p128 = scmp.ne.s32.totalorder %s113, %s127
      %p129 = scmp.eq.s32.totalorder %s19, 0
      %p130 = por %p128, %p129
      %s131 = ssub.s32 %s20, %s32
      %s132 = ssub.s32 %s21, %s28
      %s133 = sor.u32 %s131, %s132
      %p134 = scmp.eq.s32.totalorder %s133, 0
      %s136 = sadd.s32 %s135, 1
      %s137 = scalar_select %p134, %s135, %s136
      %p140 = pneg %p134
      %p141 = scmp.eq.s32.totalorder %s13, 1
      %p142 = por %p140, %p141
      %p143 = scmp.ne.s32.totalorder %s135, %s138
      %p144 = scmp.eq.s32.totalorder %s13, 0
      %p145 = por %p143, %p144
      %p146 = scmp.ne.s32.totalorder %s135, %s138
      %p147 = scmp.eq.s32.totalorder %s18, 1
      %p148 = por %p146, %p147
      %p149 = scmp.ne.s32.totalorder %s138, %s139
      %p150 = scmp.eq.s32.totalorder %s18, 0
      %p151 = por %p149, %p150
      %p152 = scmp.ne.s32.totalorder %s138, %s139
      %p153 = scmp.eq.s32.totalorder %s19, 1
      %p154 = por %p152, %p153
      %p156 = scmp.ne.s32.totalorder %s139, %s155
      %p157 = scmp.eq.s32.totalorder %s19, 0
      %p158 = por %p156, %p157
      %p159 = scmp.le.s32.totalorder 1, %s13
      %p160 = scmp.lt.s32.totalorder %s13, 3
      %p161 = pnand %p159, %p160
      %p162 = pneg %p161
      // Predicated region
      $region9: #{depthwise_separable_conv.1} parent=5 // pred_check
        _
      $region10: #{depthwise_separable_conv.1} parent=5 // pred_check_branch
        %164 = sbr.rel (%p161) target = $region12
      $region11: #{depthwise_separable_conv.1} parent=5 // pred_region
        %s165 = ssub.s32 %s13, 1
        // Predicated region
        $region13: #{depthwise_separable_conv.1} parent=11 // pred_check
          %p166 = pneg %p102
        $region14: #{depthwise_separable_conv.1} parent=11 // pred_check_branch
          %168 = sbr.rel (%p166) target = $region16
        $region15: #{depthwise_separable_conv.1} parent=11 // pred_region
          _
        $region16: #{depthwise_separable_conv.1} parent=11 // pred_fallthru
          _
        // Predicated region
        $region17: #{depthwise_separable_conv.1} parent=11 // pred_check
          %p169 = pneg %p123
        $region18: #{depthwise_separable_conv.1} parent=11 // pred_check_branch
          %171 = sbr.rel (%p169) target = $region20
        $region19: #{depthwise_separable_conv.1} parent=11 // pred_region
          _
        $region20: #{depthwise_separable_conv.1} parent=11 // pred_fallthru
          _
      $region12: #{depthwise_separable_conv.1} parent=5 // pred_fallthru
        _
      %p172 = scmp.lt.s32.totalorder %s13, 2
      // Predicated region
      $region21: #{depthwise_separable_conv.1} parent=5 // pred_check
        %p173 = pneg %p172
      $region22: #{depthwise_separable_conv.1} parent=5 // pred_check_branch
        %175 = sbr.rel (%p173) target = $region24
      $region23: #{depthwise_separable_conv.1} parent=5 // pred_region
        // Predicated region
        $region25: #{depthwise_separable_conv.1} parent=23 // pred_check
          %p176 = pneg %p47
        $region26: #{depthwise_separable_conv.1} parent=23 // pred_check_branch
          %178 = sbr.rel (%p176) target = $region28
        $region27: #{depthwise_separable_conv.1} parent=23 // pred_region
          %p179 = scmp.lt.s32.totalorder %s20, 1
          %s180 = scalar_select %p179, %s20, 1
          %p181 = scmp.lt.s32.totalorder %s21, 0
          %s182 = scalar_select %p181, %s21, 0
          %s183 = sadd.s32 %s182, %s180
          %s184 = smul.addr %s183, 4
          %s185 = scalar_lea.vmem %s0, %s184
        $region28: #{depthwise_separable_conv.1} parent=23 // pred_fallthru
          _
        // Predicated region
        $region29: #{depthwise_separable_conv.1} parent=23 // pred_check
          %p186 = pneg %p75
        $region30: #{depthwise_separable_conv.1} parent=23 // pred_check_branch
          %188 = sbr.rel (%p186) target = $region32
        $region31: #{depthwise_separable_conv.1} parent=23 // pred_region
          %p189 = scmp.lt.s32.totalorder %s20, 1
          %s190 = scalar_select %p189, %s20, 1
          %p191 = scmp.lt.s32.totalorder %s21, 0
          %s192 = scalar_select %p191, %s21, 0
          %s193 = sadd.s32 %s192, %s190
          %s194 = smul.addr %s193, 4
          %s195 = scalar_lea.vmem %s1, %s194
        $region32: #{depthwise_separable_conv.1} parent=23 // pred_fallthru
          _
      $region24: #{depthwise_separable_conv.1} parent=5 // pred_fallthru
        _
      %p196 = scmp.le.s32.totalorder 1, %s13
      %p197 = scmp.lt.s32.totalorder %s13, 3
      %p198 = pnand %p196, %p197
      %p199 = pneg %p198
      // Predicated region
      $region33: #{depthwise_separable_conv.1} parent=5 // pred_check
        _
      $region34: #{depthwise_separable_conv.1} parent=5 // pred_check_branch
        %201 = sbr.rel (%p198) target = $region36
      $region35: #{depthwise_separable_conv.1} parent=5 // pred_region
        %s202 = ssub.s32 %s13, 1
        %p203 = scmp.lt.s32.totalorder %s22, 1
        %s204 = scalar_select %p203, %s22, 1
        %p205 = scmp.lt.s32.totalorder %s23, 0
        %s206 = scalar_select %p205, %s23, 0
        %s207 = sadd.s32 %s206, %s204
        %s208 = smul.addr %s207, 4
        %s209 = scalar_lea.vmem %s0, %s208
        %p210 = pneg %p53
        %p211 = pneg %p50
        %p212 = scmp.lt.s32.totalorder %s22, 1
        %s213 = scalar_select %p212, %s22, 1
        %p214 = scmp.lt.s32.totalorder %s23, 0
        %s215 = scalar_select %p214, %s23, 0
        %s216 = sadd.s32 %s215, %s213
        %s217 = smul.addr %s216, 4
        %s218 = scalar_lea.vmem %s1, %s217
        %p219 = pneg %p81
        %p220 = pneg %p78
        %p221 = pneg %p102
        %p222 = pneg %p99
        %p223 = pneg %p123
        %p224 = pneg %p120
        %p225 = pneg %p151
        %p226 = pneg %p148
        %s227 = sand.u32 %s138, 1
        %s228 = scalar_lea.sflag [#allocation4], %s227
        %s229 = sand.u32 %s138, 1
        %s230 = smul.addr %s229, 8
        %s231 = scalar_lea.vmem [#allocation3], %s230
        %p232 = scmp.lt.s32.totalorder %s22, 1
        %s233 = scalar_select %p232, %s22, 1
        %p234 = scmp.lt.s32.totalorder %s23, 0
        %s235 = scalar_select %p234, %s23, 0
        %s236 = sadd.s32 %s235, %s233
        %s237 = smul.addr %s236, 4
        %s238 = scalar_lea.vmem %s0, %s237
        %p239 = scmp.lt.s32.totalorder %s22, 1
        %s240 = scalar_select %p239, %s22, 1
        %p241 = scmp.lt.s32.totalorder %s23, 0
        %s242 = scalar_select %p241, %s23, 0
        %s243 = sadd.s32 %s242, %s240
        %s244 = smul.addr %s243, 4
        %s245 = scalar_lea.vmem %s1, %s244
        %v246 = vld [vmem:[%s238] sm:$0xf]
        %248 = vrot.lane.b32.xlu0 %v246, 1
        %v249 = vpop.permute.xlu0 %248
        %vm251 = vcmask 134152
        %252 = vst.msk [vmem:[#allocation2] sm:$0xf] %vm251, %v249
        %v253 = vld [vmem:[%s245] sm:$0xf]
        %vm254 = vcmask 3072
        %255 = vst.msk [vmem:[#allocation2] sm:$0xf] %vm254, %v253
        %257 = vrot.lane.b32.xlu0 %v253, 16
        %v258 = vpop.permute.xlu0 %257
        %vm260 = vcmask 142472
        %261 = vst.msk [vmem:[#allocation2] sm:$0xf] %vm260, %v258
        %v262 = vld [vmem:[%s2] sm:$0xf]
        %v263 = vld [vmem:[#allocation2] sm:$0xf]
        %265 = vset.pattern.permute.xlu0 0
        %266 = vperm.xlu0 %265, %v262
        %v267 = vpop.permute.xlu0 %266
        %v269 = vmul.f32 %v263, %v267
        %270 = vset.pattern.permute.xlu0 1
        %271 = vperm.xlu0 %270, %v262
        %v272 = vpop.permute.xlu0 %271
        %v274 = vmul.f32 %v263, %v272
        %276 = vrot.lane.b32.xlu0 %v274, 127
        %v277 = vpop.permute.xlu0 %276
        %v279 = vadd.f32 %v269, %v277
        %280 = vset.pattern.permute.xlu0 2
        %281 = vperm.xlu0 %280, %v262
        %v282 = vpop.permute.xlu0 %281
        %v284 = vmul.f32 %v263, %v282
        %286 = vrot.lane.b32.xlu0 %v284, 126
        %v287 = vpop.permute.xlu0 %286
        %v289 = vadd.f32 %v279, %v287
        %v290 = vmax.f32 %v289, 0.0
        %v291 = vld [vmem:[%s3] sm:$0xff]
        %vm292 = vcmask 31744
        %v294 = vsel %vm292, %v291, 0
        %vm296 = vcmask 1043456
        %v298 = vsel %vm296, %v290, 0
        %300 = vmatprep.subr.mxu0 0.0
        %301 = vmatpush1.msra.mxu0 0.0
        %302 = vmatprep.subr.mxu0 0.0
        %303 = vmatpush1.msra.mxu0 0.0
        %304 = vmatprep.subr.mxu0 0.0
        %305 = vmatpush1.msra.mxu0 0.0
        %306 = vmatprep.subr.mxu0 0.0
        %307 = vmatpush1.msra.mxu0 0.0
        %308 = vmatprep.subr.mxu0 0.0
        %309 = vmatpush1.msra.mxu0 0.0
        %310 = vmatprep.subr.mxu0 0.0
        %311 = vmatpush1.msra.mxu0 0.0
        %312 = vmatprep.subr.mxu0 0.0
        %313 = vmatpush1.msra.mxu0 0.0
        %314 = vmatprep.subr.mxu0 0.0
        %315 = vmatpush1.msra.mxu0 0.0
        %316 = vmatprep.subr.mxu0 0.0
        %317 = vmatpush1.msra.mxu0 0.0
        %318 = vmatprep.subr.mxu0 0.0
        %319 = vmatpush1.msra.mxu0 0.0
        %320 = vmatprep.subr.mxu0 0.0
        %321 = vmatpush1.msra.mxu0 0.0
        %322 = vmatprep.subr.mxu0 0.0
        %323 = vmatpush1.msra.mxu0 0.0
        %324 = vmatprep.subr.mxu0 0.0
        %325 = vmatpush1.msra.mxu0 0.0
        %326 = vmatprep.subr.mxu0 0.0
        %327 = vmatpush1.msra.mxu0 0.0
        %328 = vmatprep.subr.mxu0 0.0
        %329 = vmatpush1.msra.mxu0 0.0
        %330 = vmatprep.subr.mxu0 0.0
        %331 = vmatpush1.msra.mxu0 %v298
        %332 = vmatprep.subr.mxu0 0.0
        %333 = vmatpush2.msra.mxu0 0.0
        %334 = vmatprep.subr.mxu0 0.0
        %335 = vmatpush2.msra.mxu0 0.0
        %336 = vmatprep.subr.mxu0 0.0
        %337 = vmatpush2.msra.mxu0 0.0
        %338 = vmatprep.subr.mxu0 0.0
        %339 = vmatpush2.msra.mxu0 0.0
        %340 = vmatprep.subr.mxu0 0.0
        %341 = vmatpush2.msra.mxu0 0.0
        %342 = vmatprep.subr.mxu0 0.0
        %343 = vmatpush2.msra.mxu0 0.0
        %344 = vmatprep.subr.mxu0 0.0
        %345 = vmatpush2.msra.mxu0 0.0
        %346 = vmatprep.subr.mxu0 0.0
        %347 = vmatpush2.msra.mxu0 0.0
        %348 = vmatprep.subr.mxu0 0.0
        %349 = vmatpush2.msra.mxu0 0.0
        %350 = vmatprep.subr.mxu0 0.0
        %351 = vmatpush2.msra.mxu0 0.0
        %352 = vmatprep.subr.mxu0 0.0
        %353 = vmatpush2.msra.mxu0 0.0
        %354 = vmatprep.subr.mxu0 0.0
        %355 = vmatpush2.msra.mxu0 0.0
        %356 = vmatprep.subr.mxu0 0.0
        %357 = vmatpush2.msra.mxu0 0.0
        %358 = vmatprep.subr.mxu0 0.0
        %359 = vmatpush2.msra.mxu0 0.0
        %360 = vmatprep.subr.mxu0 0.0
        %361 = vmatpush2.msra.mxu0 0.0
        %362 = vmatprep.subr.mxu0 0.0
        %363 = vmatpush2.msra.mxu0 0.0
        %364 = vmatprep.mubr.f32.mxu0 0.0
        %365 = vmatmul.mubr.f32.gmra.mxu0 %v294
        %v366 = vpop.f32.mrf.mxu0
        %v367 = vadd.f32 0.0, %v366
        %v368 = vpop.f32.mrf.mxu0
        %369 = vdwg.mxu0
        %vm370 = vcmask 130048
        %371 = vst.msk [vmem:[%s231] sm:$0xff] %vm370, %v367
        %s372 = sand.u32 %s138, 1
        %s373 = scalar_lea.sflag [#allocation4], %s372
        %s374 = sand.u32 %s138, 1
        %s375 = smul.addr %s374, 8
        %s376 = scalar_lea.vmem [#allocation3], %s375
        // Predicated region
        $region37: #{depthwise_separable_conv.1} parent=35 // pred_check
          %p377 = pneg %p148
        $region38: #{depthwise_separable_conv.1} parent=35 // pred_check_branch
          %379 = sbr.rel (%p377) target = $region40
        $region39: #{depthwise_separable_conv.1} parent=35 // pred_region
          %s381 = ssub.s32 128, 128
          %382 = vsyncadd %s373, %s381
          %s383 = sadd.s32 %s23, %s22
          %s384 = smul.addr %s383, 128
          %s385 = scalar_lea.hbm %s4, %s384
          %s387 = sshll.u32 %s376, 4
          %s388 = int_to_ptr.vmem [resolvable:$true] %s387
          %390 = dma.vmem_to_hbm [thread:$0]  %s388, 128, %s385, %s373
        $region40: #{depthwise_separable_conv.1} parent=35 // pred_fallthru
          _
      $region36: #{depthwise_separable_conv.1} parent=5 // pred_fallthru
        _
      %p391 = scmp.le.s32.totalorder 2, %s13
      // Predicated region
      $region41: #{depthwise_separable_conv.1} parent=5 // pred_check
        %p392 = pneg %p391
      $region42: #{depthwise_separable_conv.1} parent=5 // pred_check_branch
        %394 = sbr.rel (%p392) target = $region44
      $region43: #{depthwise_separable_conv.1} parent=5 // pred_region
        %s395 = ssub.s32 %s13, 2
        // Predicated region
        $region45: #{depthwise_separable_conv.1} parent=43 // pred_check
          %p396 = pneg %p154
        $region46: #{depthwise_separable_conv.1} parent=43 // pred_check_branch
          %398 = sbr.rel (%p396) target = $region48
        $region47: #{depthwise_separable_conv.1} parent=43 // pred_region
          %s399 = sand.u32 %s139, 1
          %s400 = scalar_lea.sflag [#allocation4], %s399
          %s401 = sand.u32 %s139, 1
          %s402 = smul.addr %s401, 8
          %s403 = scalar_lea.vmem [#allocation3], %s402
          %404 = dma.done %s400, 128
        $region48: #{depthwise_separable_conv.1} parent=43 // pred_fallthru
          _
      $region44: #{depthwise_separable_conv.1} parent=5 // pred_fallthru
        _
    $region6: #{depthwise_separable_conv.1} parent=1 // loop_footer
      %s17 = sadd.s32 1, %s13
    $region7: #{depthwise_separable_conv.1} parent=1 // loop_footer_branch
      %12 = sbr.rel target = $region3
    $region8: #{depthwise_separable_conv.1} parent=1 // loop_exit
      _
    %405 = vsyncpa [#allocation4], 1
    %s406 = scalar_lea.sflag [#allocation4], 1
    %407 = vsyncpa %s406, 1

</llo_original>
